<compile_context>
chip_gen: v7x
topology: tpu7x:2x2x1
jax: 0.10.0
libtpu: 0.0.40
codegen_flags: <defaults>
</compile_context>

<pallas_src>
import jax
import jax.numpy as jnp
from jax.experimental import pallas as pl
from jax.experimental.pallas import tpu as pltpu

MARGIN1 = 0.3
MARGIN2 = 2.2
EPS = 1e-06  # present in the PyTorch module but unused in forward (kept for parity)

LANE = 128
_TARGET_ROWS = 16  # 16 rows * 128 lanes = 2048 elements per spatial tile


def _pick_rows_per_tile(rows_total, target=_TARGET_ROWS):
    """Rows-per-tile: multiple of 8 dividing rows_total, else the full extent."""
    if rows_total <= target:
        return rows_total
    for r in range(target, 7, -1):
        if rows_total % r == 0 and r % 8 == 0:
            return r
    return rows_total  # no nice divisor: keep the spatial axis whole


def _contrastive_loss_kernel(x1_ref, x2_ref, y_ref, out_ref):
    # x1_ref, x2_ref: (1, C, R, 128) native dtype; y_ref: (1, R, 128);
    # out_ref:        (1, R, 128) f32, resident across the spatial grid axis.
    @pl.when(pl.program_id(1) == 0)
    def _init():
        out_ref[...] = jnp.zeros_like(out_ref)

    C = x1_ref.shape[1]
    # Unrolled channel reduction: per-lane VPU multiply-adds, f32 accumulation.
    d = x1_ref[:, 0].astype(jnp.float32) - x2_ref[:, 0].astype(jnp.float32)
    sq = d * d
    for c in range(1, C):
        d = x1_ref[:, c].astype(jnp.float32) - x2_ref[:, c].astype(jnp.float32)
        sq = sq + d * d

    dist = jnp.sqrt(sq)                                  # (1, R, 128)
    y = y_ref[...].astype(jnp.float32)
    mdist_bg = jnp.maximum(dist - MARGIN1, 0.0)
    mdist_obj = jnp.maximum(MARGIN2 - dist, 0.0)
    # Fused single sum: both PyTorch means share the divisor N*H*W (applied in wrapper).
    loss = mdist_obj * mdist_obj * y + mdist_bg * mdist_bg * (1.0 - y)

    out_ref[...] += loss


def contrastive_loss(x1, x2, y):
    """x1, x2: [N, C, H, W]; y: [N, H, W]. Returns scalar f32 loss."""
    N, C, H, W = x1.shape
    HW = H * W
    hw_pad = pl.cdiv(HW, LANE) * LANE

    x1f = x1.reshape(N, C, HW)
    x2f = x2.reshape(N, C, HW)
    yf = y.reshape(N, HW)
    if hw_pad != HW:
        # Zero padding (x1 == x2 == 0, y == 0) contributes exactly 0 to both terms;
        # the true divisor N*HW is used below.
        pad = hw_pad - HW
        x1f = jnp.pad(x1f, ((0, 0), (0, 0), (0, pad)))
        x2f = jnp.pad(x2f, ((0, 0), (0, 0), (0, pad)))
        yf = jnp.pad(yf, ((0, 0), (0, pad)))

    rows_total = hw_pad // LANE
    R = _pick_rows_per_tile(rows_total)
    num_s_tiles = rows_total // R

    # Lane-dense layout: spatial axis folded into (rows, 128).
    x1r = x1f.reshape(N, C, rows_total, LANE)
    x2r = x2f.reshape(N, C, rows_total, LANE)
    yr = yf.reshape(N, rows_total, LANE)

    partials = pl.pallas_call(
        _contrastive_loss_kernel,
        out_shape=jax.ShapeDtypeStruct((N, R, LANE), jnp.float32),
        grid_spec=pltpu.PrefetchScalarGridSpec(
            num_scalar_prefetch=0,
            grid=(N, num_s_tiles),  # N parallel, spatial reduction last
            in_specs=[
                pl.BlockSpec((1, C, R, LANE), lambda n, s: (n, 0, s, 0)),
                pl.BlockSpec((1, C, R, LANE), lambda n, s: (n, 0, s, 0)),
                pl.BlockSpec((1, R, LANE), lambda n, s: (n, s, 0)),
            ],
            out_specs=pl.BlockSpec((1, R, LANE), lambda n, s: (n, 0, 0)),
        ),
        compiler_params=pltpu.CompilerParams(
            dimension_semantics=("parallel", "arbitrary"),
            vmem_limit_bytes=32 * 1024 * 1024,
        ),
    )(x1r, x2r, yr)

    # Final tiny collapse + shared mean divisor (true N*H*W, not padded count).
    return jnp.sum(partials) / jnp.float32(N * HW)


def _reference_loss(x1, x2, y):
    dist = jnp.sqrt(jnp.sum((x1 - x2) ** 2, axis=1))      # (N, H, W)
    mdist_bg = jnp.maximum(dist - MARGIN1, 0.0)
    mdist_obj = jnp.maximum(MARGIN2 - dist, 0.0)
    loss_bg = mdist_bg**2 * (1.0 - y)
    loss_obj = mdist_obj**2 * y
    return jnp.mean(loss_obj) + jnp.mean(loss_bg)


if __name__ == "__main__":
    key = jax.random.PRNGKey(0)
    k1, k2, k3 = jax.random.split(key, 3)

    N, C, H, W = 2, 4, 16, 16
    x1 = jax.random.normal(k1, (N, C, H, W), dtype=jnp.float32)
    x2 = jax.random.normal(k2, (N, C, H, W), dtype=jnp.float32)
    # binary mask target, same role as `y` in the PyTorch module
    y = (jax.random.uniform(k3, (N, H, W)) > 0.5).astype(jnp.float32)

    loss = contrastive_loss(x1, x2, y)
    jax.block_until_ready(loss)

    ref = _reference_loss(x1, x2, y)
    assert jnp.allclose(loss, ref, rtol=1e-5, atol=1e-5), (loss, ref)

    print("KERNEL_OK")
</pallas_src>

<mosaic_0001>
module attributes {stable_mosaic.version = 11 : i64} {
  func.func @_contrastive_loss_kernel(%arg0: i32, %arg1: i32, %arg2: memref<1x4x2x128xf32, #tpu.memory_space<vmem>>, %arg3: memref<1x4x2x128xf32, #tpu.memory_space<vmem>>, %arg4: memref<1x2x128xf32, #tpu.memory_space<vmem>>, %arg5: memref<1x2x128xf32, #tpu.memory_space<vmem>>) attributes {dimension_semantics = [#tpu.dimension_semantics<parallel>, #tpu.dimension_semantics<arbitrary>], iteration_bounds = array<i64: 2, 1>, scalar_prefetch = 0 : i64, scratch_operands = 0 : i64, tpu.core_type = #tpu.core_type<tc>, window_params = [{transform_indices = @transform_0, window_bounds = array<i64: 1, 4, 2, 128>}, {transform_indices = @transform_1, window_bounds = array<i64: 1, 4, 2, 128>}, {transform_indices = @transform_2, window_bounds = array<i64: 1, 2, 128>}, {transform_indices = @transform_3, window_bounds = array<i64: 1, 2, 128>}]} {
    %c0_i32 = arith.constant 0 : i32
    %0 = arith.cmpi eq, %arg1, %c0_i32 : i32
    %1 = arith.extui %0 : i1 to i32
    %c0_i32_0 = arith.constant 0 : i32
    %2 = arith.cmpi ne, %1, %c0_i32_0 : i32
    scf.if %2 {
      %cst_42 = arith.constant 0.000000e+00 : f32
      %50 = vector.broadcast %cst_42 : f32 to vector<1x2x128xf32>
      %c0_43 = arith.constant 0 : index
      %c0_44 = arith.constant 0 : index
      %c0_45 = arith.constant 0 : index
      %51 = vector.load %arg5[%c0_43, %c0_44, %c0_45] : memref<1x2x128xf32, #tpu.memory_space<vmem>>, vector<1x2x128xf32>
      tpu.vector_store %arg5[%c0_43, %c0_44, %c0_45], %50 {strides = array<i32>} : memref<1x2x128xf32, #tpu.memory_space<vmem>>, vector<1x2x128xf32>,
    } else {
    }
    %c0 = arith.constant 0 : index
    %c0_1 = arith.constant 0 : index
    %c0_2 = arith.constant 0 : index
    %c0_3 = arith.constant 0 : index
    %3 = vector.load %arg2[%c0, %c0_1, %c0_2, %c0_3] : memref<1x4x2x128xf32, #tpu.memory_space<vmem>>, vector<1x1x2x128xf32>
    %4 = vector.shape_cast %3 : vector<1x1x2x128xf32> to vector<1x2x128xf32>
    %c0_4 = arith.constant 0 : index
    %c0_5 = arith.constant 0 : index
    %c0_6 = arith.constant 0 : index
    %c0_7 = arith.constant 0 : index
    %5 = vector.load %arg3[%c0_4, %c0_5, %c0_6, %c0_7] : memref<1x4x2x128xf32, #tpu.memory_space<vmem>>, vector<1x1x2x128xf32>
    %6 = vector.shape_cast %5 : vector<1x1x2x128xf32> to vector<1x2x128xf32>
    %7 = arith.subf %4, %6 : vector<1x2x128xf32>
    %8 = arith.mulf %7, %7 : vector<1x2x128xf32>
    %c0_8 = arith.constant 0 : index
    %c1 = arith.constant 1 : index
    %c0_9 = arith.constant 0 : index
    %c0_10 = arith.constant 0 : index
    %9 = vector.load %arg2[%c0_8, %c1, %c0_9, %c0_10] : memref<1x4x2x128xf32, #tpu.memory_space<vmem>>, vector<1x1x2x128xf32>
    %10 = vector.shape_cast %9 : vector<1x1x2x128xf32> to vector<1x2x128xf32>
    %c0_11 = arith.constant 0 : index
    %c1_12 = arith.constant 1 : index
    %c0_13 = arith.constant 0 : index
    %c0_14 = arith.constant 0 : index
    %11 = vector.load %arg3[%c0_11, %c1_12, %c0_13, %c0_14] : memref<1x4x2x128xf32, #tpu.memory_space<vmem>>, vector<1x1x2x128xf32>
    %12 = vector.shape_cast %11 : vector<1x1x2x128xf32> to vector<1x2x128xf32>
    %13 = arith.subf %10, %12 : vector<1x2x128xf32>
    %14 = arith.mulf %13, %13 : vector<1x2x128xf32>
    %15 = arith.addf %8, %14 : vector<1x2x128xf32>
    %c0_15 = arith.constant 0 : index
    %c2 = arith.constant 2 : index
    %c0_16 = arith.constant 0 : index
    %c0_17 = arith.constant 0 : index
    %16 = vector.load %arg2[%c0_15, %c2, %c0_16, %c0_17] : memref<1x4x2x128xf32, #tpu.memory_space<vmem>>, vector<1x1x2x128xf32>
    %17 = vector.shape_cast %16 : vector<1x1x2x128xf32> to vector<1x2x128xf32>
    %c0_18 = arith.constant 0 : index
    %c2_19 = arith.constant 2 : index
    %c0_20 = arith.constant 0 : index
    %c0_21 = arith.constant 0 : index
    %18 = vector.load %arg3[%c0_18, %c2_19, %c0_20, %c0_21] : memref<1x4x2x128xf32, #tpu.memory_space<vmem>>, vector<1x1x2x128xf32>
    %19 = vector.shape_cast %18 : vector<1x1x2x128xf32> to vector<1x2x128xf32>
    %20 = arith.subf %17, %19 : vector<1x2x128xf32>
    %21 = arith.mulf %20, %20 : vector<1x2x128xf32>
    %22 = arith.addf %15, %21 : vector<1x2x128xf32>
    %c0_22 = arith.constant 0 : index
    %c3 = arith.constant 3 : index
    %c0_23 = arith.constant 0 : index
    %c0_24 = arith.constant 0 : index
    %23 = vector.load %arg2[%c0_22, %c3, %c0_23, %c0_24] : memref<1x4x2x128xf32, #tpu.memory_space<vmem>>, vector<1x1x2x128xf32>
    %24 = vector.shape_cast %23 : vector<1x1x2x128xf32> to vector<1x2x128xf32>
    %c0_25 = arith.constant 0 : index
    %c3_26 = arith.constant 3 : index
    %c0_27 = arith.constant 0 : index
    %c0_28 = arith.constant 0 : index
    %25 = vector.load %arg3[%c0_25, %c3_26, %c0_27, %c0_28] : memref<1x4x2x128xf32, #tpu.memory_space<vmem>>, vector<1x1x2x128xf32>
    %26 = vector.shape_cast %25 : vector<1x1x2x128xf32> to vector<1x2x128xf32>
    %27 = arith.subf %24, %26 : vector<1x2x128xf32>
    %28 = arith.mulf %27, %27 : vector<1x2x128xf32>
    %29 = arith.addf %22, %28 : vector<1x2x128xf32>
    %30 = math.sqrt %29 : vector<1x2x128xf32>
    %c0_29 = arith.constant 0 : index
    %c0_30 = arith.constant 0 : index
    %c0_31 = arith.constant 0 : index
    %31 = vector.load %arg4[%c0_29, %c0_30, %c0_31] : memref<1x2x128xf32, #tpu.memory_space<vmem>>, vector<1x2x128xf32>
    %cst = arith.constant 3.000000e-01 : f32
    %32 = vector.broadcast %cst : f32 to vector<1x2x128xf32>
    %33 = arith.subf %30, %32 : vector<1x2x128xf32>
    %cst_32 = arith.constant 0.000000e+00 : f32
    %34 = vector.broadcast %cst_32 : f32 to vector<1x2x128xf32>
    %35 = arith.maximumf %33, %34 : vector<1x2x128xf32>
    %cst_33 = arith.constant 2.200000e+00 : f32
    %36 = vector.broadcast %cst_33 : f32 to vector<1x2x128xf32>
    %37 = arith.subf %36, %30 : vector<1x2x128xf32>
    %cst_34 = arith.constant 0.000000e+00 : f32
    %38 = vector.broadcast %cst_34 : f32 to vector<1x2x128xf32>
    %39 = arith.maximumf %37, %38 : vector<1x2x128xf32>
    %40 = arith.mulf %39, %39 : vector<1x2x128xf32>
    %41 = arith.mulf %40, %31 : vector<1x2x128xf32>
    %42 = arith.mulf %35, %35 : vector<1x2x128xf32>
    %cst_35 = arith.constant 1.000000e+00 : f32
    %43 = vector.broadcast %cst_35 : f32 to vector<1x2x128xf32>
    %44 = arith.subf %43, %31 : vector<1x2x128xf32>
    %45 = arith.mulf %42, %44 : vector<1x2x128xf32>
    %46 = arith.addf %41, %45 : vector<1x2x128xf32>
    %c0_36 = arith.constant 0 : index
    %c0_37 = arith.constant 0 : index
    %c0_38 = arith.constant 0 : index
    %47 = vector.load %arg5[%c0_36, %c0_37, %c0_38] : memref<1x2x128xf32, #tpu.memory_space<vmem>>, vector<1x2x128xf32>
    %48 = arith.addf %47, %46 : vector<1x2x128xf32>
    %c0_39 = arith.constant 0 : index
    %c0_40 = arith.constant 0 : index
    %c0_41 = arith.constant 0 : index
    %49 = vector.load %arg5[%c0_39, %c0_40, %c0_41] : memref<1x2x128xf32, #tpu.memory_space<vmem>>, vector<1x2x128xf32>
    tpu.vector_store %arg5[%c0_39, %c0_40, %c0_41], %48 {strides = array<i32>} : memref<1x2x128xf32, #tpu.memory_space<vmem>>, vector<1x2x128xf32>,
    return
  }
  func.func @transform_0(%arg0: i32, %arg1: i32) -> (i32, i32, i32, i32) {
    %c0_i32 = arith.constant 0 : i32
    %c0_i32_0 = arith.constant 0 : i32
    %c0_i32_1 = arith.constant 0 : i32
    return %arg0, %c0_i32, %arg1, %c0_i32_0 : i32, i32, i32, i32
  }
  func.func @transform_1(%arg0: i32, %arg1: i32) -> (i32, i32, i32, i32) {
    %c0_i32 = arith.constant 0 : i32
    %c0_i32_0 = arith.constant 0 : i32
    %c0_i32_1 = arith.constant 0 : i32
    return %arg0, %c0_i32, %arg1, %c0_i32_0 : i32, i32, i32, i32
  }
  func.func @transform_2(%arg0: i32, %arg1: i32) -> (i32, i32, i32) {
    %c0_i32 = arith.constant 0 : i32
    %c0_i32_0 = arith.constant 0 : i32
    return %arg0, %arg1, %c0_i32 : i32, i32, i32
  }
  func.func @transform_3(%arg0: i32, %arg1: i32) -> (i32, i32, i32) {
    %c0_i32 = arith.constant 0 : i32
    %c0_i32_0 = arith.constant 0 : i32
    %c0_i32_1 = arith.constant 0 : i32
    return %arg0, %c0_i32, %c0_i32_0 : i32, i32, i32
  }
}

</mosaic_0001>

<llo_original>
// kernel: tpu_custom_call.1
$region0: #{tpu_custom_call.1}
  #allocation0 [shape = 'u32[]', space=smem, size = 0x4, offset = 0x4, fixed_abs, tag = 'smem constant byte address 0x4 - core index']
  #allocation1 [shape = 'u32[144,128]{1,0:T(1,128)}', space=vmem, size = 0x12000, scoped, tag = 'internal scratch']
  %s0 = inlined_call_operand.hbm [shape: f32[2,4,2,128], index: 0, kind: input, shape index: {}]
  %s1 = inlined_call_operand.hbm [shape: f32[2,4,2,128], index: 1, kind: input, shape index: {}]
  %s2 = inlined_call_operand.vmem [shape: f32[2,2,128], index: 2, kind: input, shape index: {}]
  %s3 = inlined_call_operand.hbm [shape: f32[2,2,128], index: 3, kind: output, shape index: {}]
  %s4 = sld [smem:[#allocation0]]
  $region57: #{tpu_custom_call.1} parent=0
    _
  %s6 = ssub.s32 1, %s4
  %s7 = scalar_select 0, %s6, %s4
  $region1: #{tpu_custom_call.1} parent=0
    #allocation2 [shape = 'u8[8192]{0}', space=vmem, size = 0x2000, scoped, tag = 'input window, operand 0']
    #allocation3 [shape = 's32[2]{0}', space=sflag, size = 0x8, scoped, tag = 'scoped memory for tpu_custom_call.1']
    #allocation4 [shape = 's32[2]{0}', space=sflag, size = 0x8, scoped, tag = 'scoped memory for tpu_custom_call.1']
    #allocation5 [shape = 'u8[8192]{0}', space=vmem, size = 0x2000, scoped, tag = 'input window, operand 1']
    #allocation6 [shape = 's32[2]{0}', space=sflag, size = 0x8, scoped, tag = 'scoped memory for tpu_custom_call.1']
    #allocation7 [shape = 'u8[2048]{0}', space=vmem, size = 0x800, scoped, tag = 'output window, operand 0']
    %8 = vsyncpa [#allocation3], 0
    %s9 = scalar_lea.sflag [#allocation3], 1
    %10 = vsyncpa %s9, 0
    %11 = vsyncpa [#allocation6], 0
    %s12 = scalar_lea.sflag [#allocation6], 1
    %13 = vsyncpa %s12, 0
    %14 = vsyncpa [#allocation4], 0
    %s15 = scalar_lea.sflag [#allocation4], 1
    %16 = vsyncpa %s15, 0
    loop: start=0, step=1, limit=4
    $region2: #{tpu_custom_call.1} parent=1 // loop_pre_header
      _
    $region3: #{tpu_custom_call.1} parent=1 // loop_header
      %s18 = sphi 0, %s22
      %p19 = scmp.ge.s32.totalorder %s18, 4
      %s25 = sphi 0, %s37
      %s26 = sphi 0, %s33
      %s27 = sphi 0, %s25
      %s28 = sphi 0, %s26
      %s29 = sphi 0, %s27
      %s30 = sphi 0, %s28
      %s42 = sphi 0, %s44
      %s45 = sphi 0, %s42
      %s46 = sphi 0, %s45
      %s62 = sphi 0, %s46
      %s70 = sphi 0, %s72
      %s73 = sphi 0, %s70
      %s74 = sphi 0, %s73
      %s90 = sphi 0, %s74
      %s98 = sphi 0, %s100
      %s101 = sphi 0, %s98
      %s102 = sphi 0, %s101
      %s118 = sphi 0, %s102
      %s124 = sphi 0, %s126
      %s127 = sphi 0, %s124
      %s128 = sphi 0, %s127
      %s144 = sphi 0, %s128
    $region4: #{tpu_custom_call.1} parent=1 // loop_header_branch
      %21 = sbr.rel (%p19) target = $region8
    $region5: #{tpu_custom_call.1} parent=1 // loop_body
      %s23 = ssub.s32 %s18, 1
      %s24 = ssub.s32 %s18, 2
      %s31 = sadd.s32 1, %s26
      %p32 = scmp.ge.s32.totalorder %s31, 1
      %s33 = scalar_select %p32, 0, %s31
      %s34 = sadd.s32 1, %s25
      %s35 = scalar_select %p32, %s34, %s25
      %p36 = scmp.ge.s32.totalorder %s35, 2
      %s37 = scalar_select %p36, 0, %s35
      %s38 = ssub.s32 %s25, %s37
      %s39 = ssub.s32 %s26, %s33
      %s40 = sor.u32 %s38, %s39
      %p41 = scmp.eq.s32.totalorder %s40, 0
      %s43 = sadd.s32 %s42, 1
      %s44 = scalar_select %p41, %s42, %s43
      %p47 = pneg %p41
      %p48 = scmp.eq.s32.totalorder %s18, 1
      %p49 = por %p47, %p48
      %p50 = scmp.ne.s32.totalorder %s42, %s45
      %p51 = scmp.eq.s32.totalorder %s18, 0
      %p52 = por %p50, %p51
      %p53 = scmp.ne.s32.totalorder %s42, %s45
      %p54 = scmp.eq.s32.totalorder %s23, 1
      %p55 = por %p53, %p54
      %p56 = scmp.ne.s32.totalorder %s45, %s46
      %p57 = scmp.eq.s32.totalorder %s23, 0
      %p58 = por %p56, %p57
      %p59 = scmp.ne.s32.totalorder %s45, %s46
      %p60 = scmp.eq.s32.totalorder %s24, 1
      %p61 = por %p59, %p60
      %p63 = scmp.ne.s32.totalorder %s46, %s62
      %p64 = scmp.eq.s32.totalorder %s24, 0
      %p65 = por %p63, %p64
      %s66 = ssub.s32 %s25, %s37
      %s67 = ssub.s32 %s26, %s33
      %s68 = sor.u32 %s66, %s67
      %p69 = scmp.eq.s32.totalorder %s68, 0
      %s71 = sadd.s32 %s70, 1
      %s72 = scalar_select %p69, %s70, %s71
      %p75 = pneg %p69
      %p76 = scmp.eq.s32.totalorder %s18, 1
      %p77 = por %p75, %p76
      %p78 = scmp.ne.s32.totalorder %s70, %s73
      %p79 = scmp.eq.s32.totalorder %s18, 0
      %p80 = por %p78, %p79
      %p81 = scmp.ne.s32.totalorder %s70, %s73
      %p82 = scmp.eq.s32.totalorder %s23, 1
      %p83 = por %p81, %p82
      %p84 = scmp.ne.s32.totalorder %s73, %s74
      %p85 = scmp.eq.s32.totalorder %s23, 0
      %p86 = por %p84, %p85
      %p87 = scmp.ne.s32.totalorder %s73, %s74
      %p88 = scmp.eq.s32.totalorder %s24, 1
      %p89 = por %p87, %p88
      %p91 = scmp.ne.s32.totalorder %s74, %s90
      %p92 = scmp.eq.s32.totalorder %s24, 0
      %p93 = por %p91, %p92
      %s94 = ssub.s32 %s25, %s37
      %s95 = ssub.s32 %s26, %s33
      %s96 = sor.u32 %s94, %s95
      %p97 = scmp.eq.s32.totalorder %s96, 0
      %s99 = sadd.s32 %s98, 1
      %s100 = scalar_select %p97, %s98, %s99
      %p103 = pneg %p97
      %p104 = scmp.eq.s32.totalorder %s18, 1
      %p105 = por %p103, %p104
      %p106 = scmp.ne.s32.totalorder %s98, %s101
      %p107 = scmp.eq.s32.totalorder %s18, 0
      %p108 = por %p106, %p107
      %p109 = scmp.ne.s32.totalorder %s98, %s101
      %p110 = scmp.eq.s32.totalorder %s23, 1
      %p111 = por %p109, %p110
      %p112 = scmp.ne.s32.totalorder %s101, %s102
      %p113 = scmp.eq.s32.totalorder %s23, 0
      %p114 = por %p112, %p113
      %p115 = scmp.ne.s32.totalorder %s101, %s102
      %p116 = scmp.eq.s32.totalorder %s24, 1
      %p117 = por %p115, %p116
      %p119 = scmp.ne.s32.totalorder %s102, %s118
      %p120 = scmp.eq.s32.totalorder %s24, 0
      %p121 = por %p119, %p120
      %s122 = ssub.s32 %s25, %s37
      %p123 = scmp.eq.s32.totalorder %s122, 0
      %s125 = sadd.s32 %s124, 1
      %s126 = scalar_select %p123, %s124, %s125
      %p129 = pneg %p123
      %p130 = scmp.eq.s32.totalorder %s18, 1
      %p131 = por %p129, %p130
      %p132 = scmp.ne.s32.totalorder %s124, %s127
      %p133 = scmp.eq.s32.totalorder %s18, 0
      %p134 = por %p132, %p133
      %p135 = scmp.ne.s32.totalorder %s124, %s127
      %p136 = scmp.eq.s32.totalorder %s23, 1
      %p137 = por %p135, %p136
      %p138 = scmp.ne.s32.totalorder %s127, %s128
      %p139 = scmp.eq.s32.totalorder %s23, 0
      %p140 = por %p138, %p139
      %p141 = scmp.ne.s32.totalorder %s127, %s128
      %p142 = scmp.eq.s32.totalorder %s24, 1
      %p143 = por %p141, %p142
      %p145 = scmp.ne.s32.totalorder %s128, %s144
      %p146 = scmp.eq.s32.totalorder %s24, 0
      %p147 = por %p145, %p146
      %p148 = scmp.le.s32.totalorder 1, %s18
      %p149 = scmp.lt.s32.totalorder %s18, 3
      %p150 = pnand %p148, %p149
      %p151 = pneg %p150
      // Predicated region
      $region9: #{tpu_custom_call.1} parent=5 // pred_check
        _
      $region10: #{tpu_custom_call.1} parent=5 // pred_check_branch
        %153 = sbr.rel (%p150) target = $region12
      $region11: #{tpu_custom_call.1} parent=5 // pred_region
        %s154 = ssub.s32 %s18, 1
      $region12: #{tpu_custom_call.1} parent=5 // pred_fallthru
        _
      %p155 = scmp.lt.s32.totalorder %s18, 2
      // Predicated region
      $region13: #{tpu_custom_call.1} parent=5 // pred_check
        %p156 = pneg %p155
      $region14: #{tpu_custom_call.1} parent=5 // pred_check_branch
        %158 = sbr.rel (%p156) target = $region16
      $region15: #{tpu_custom_call.1} parent=5 // pred_region
        // Predicated region
        $region17: #{tpu_custom_call.1} parent=15 // pred_check
          %p159 = pneg %p52
        $region18: #{tpu_custom_call.1} parent=15 // pred_check_branch
          %161 = sbr.rel (%p159) target = $region20
        $region19: #{tpu_custom_call.1} parent=15 // pred_region
          %s162 = sand.u32 %s42, 1
          %s163 = scalar_lea.sflag [#allocation3], %s162
          %s164 = sand.u32 %s42, 1
          %s165 = smul.addr %s164, 8
          %s166 = scalar_lea.vmem [#allocation2], %s165
          %s168 = ssub.s32 128, 128
          %169 = vsyncadd %s163, %s168
          %s170 = smul.addr %s25, 4
          %s171 = sadd.s32 %s26, %s170
          %s172 = smul.addr %s171, 32
          %s173 = scalar_lea.hbm %s0, %s172
          %s174 = sshll.u32 %s166, 4
          %s175 = int_to_ptr.vmem [resolvable:$true] %s174
          %180 = dma.hbm_to_vmem [thread:$0]  %s173, 128, %s175, %s163, 32, 32, 2
        $region20: #{tpu_custom_call.1} parent=15 // pred_fallthru
          _
        // Predicated region
        $region21: #{tpu_custom_call.1} parent=15 // pred_check
          %p181 = pneg %p80
        $region22: #{tpu_custom_call.1} parent=15 // pred_check_branch
          %183 = sbr.rel (%p181) target = $region24
        $region23: #{tpu_custom_call.1} parent=15 // pred_region
          %s184 = sand.u32 %s70, 1
          %s185 = scalar_lea.sflag [#allocation6], %s184
          %s186 = sand.u32 %s70, 1
          %s187 = smul.addr %s186, 8
          %s188 = scalar_lea.vmem [#allocation5], %s187
          %s190 = ssub.s32 128, 128
          %191 = vsyncadd %s185, %s190
          %s192 = smul.addr %s25, 4
          %s193 = sadd.s32 %s26, %s192
          %s194 = smul.addr %s193, 32
          %s195 = scalar_lea.hbm %s1, %s194
          %s196 = sshll.u32 %s188, 4
          %s197 = int_to_ptr.vmem [resolvable:$true] %s196
          %202 = dma.hbm_to_vmem [thread:$0]  %s195, 128, %s197, %s185, 32, 32, 2
        $region24: #{tpu_custom_call.1} parent=15 // pred_fallthru
          _
        // Predicated region
        $region25: #{tpu_custom_call.1} parent=15 // pred_check
          %p203 = pneg %p108
        $region26: #{tpu_custom_call.1} parent=15 // pred_check_branch
          %205 = sbr.rel (%p203) target = $region28
        $region27: #{tpu_custom_call.1} parent=15 // pred_region
          %p206 = scmp.lt.s32.totalorder %s25, 1
          %s207 = scalar_select %p206, %s25, 1
          %p208 = scmp.lt.s32.totalorder %s26, 0
          %s209 = scalar_select %p208, %s26, 0
          %s210 = sadd.s32 %s209, %s207
          %s211 = smul.addr %s210, 2
          %s212 = scalar_lea.vmem %s2, %s211
        $region28: #{tpu_custom_call.1} parent=15 // pred_fallthru
          _
      $region16: #{tpu_custom_call.1} parent=5 // pred_fallthru
        _
      %p213 = scmp.le.s32.totalorder 1, %s18
      %p214 = scmp.lt.s32.totalorder %s18, 3
      %p215 = pnand %p213, %p214
      %p216 = pneg %p215
      // Predicated region
      $region29: #{tpu_custom_call.1} parent=5 // pred_check
        _
      $region30: #{tpu_custom_call.1} parent=5 // pred_check_branch
        %218 = sbr.rel (%p215) target = $region32
      $region31: #{tpu_custom_call.1} parent=5 // pred_region
        %s219 = ssub.s32 %s18, 1
        %s220 = sand.u32 %s45, 1
        %s221 = scalar_lea.sflag [#allocation3], %s220
        %s222 = sand.u32 %s45, 1
        %s223 = smul.addr %s222, 8
        %s224 = scalar_lea.vmem [#allocation2], %s223
        // Predicated region
        $region33: #{tpu_custom_call.1} parent=31 // pred_check
          %p225 = pneg %p58
        $region34: #{tpu_custom_call.1} parent=31 // pred_check_branch
          %227 = sbr.rel (%p225) target = $region36
        $region35: #{tpu_custom_call.1} parent=31 // pred_region
          %228 = dma.done %s221, 128
        $region36: #{tpu_custom_call.1} parent=31 // pred_fallthru
          _
        %s229 = sand.u32 %s73, 1
        %s230 = scalar_lea.sflag [#allocation6], %s229
        %s231 = sand.u32 %s73, 1
        %s232 = smul.addr %s231, 8
        %s233 = scalar_lea.vmem [#allocation5], %s232
        // Predicated region
        $region37: #{tpu_custom_call.1} parent=31 // pred_check
          %p234 = pneg %p86
        $region38: #{tpu_custom_call.1} parent=31 // pred_check_branch
          %236 = sbr.rel (%p234) target = $region40
        $region39: #{tpu_custom_call.1} parent=31 // pred_region
          %237 = dma.done %s230, 128
        $region40: #{tpu_custom_call.1} parent=31 // pred_fallthru
          _
        %s238 = sand.u32 %s45, 1
        %s239 = scalar_lea.sflag [#allocation3], %s238
        %s240 = sand.u32 %s45, 1
        %s241 = smul.addr %s240, 8
        %s242 = scalar_lea.vmem [#allocation2], %s241
        %p243 = pneg %p58
        %p244 = pneg %p55
        %s245 = sand.u32 %s73, 1
        %s246 = scalar_lea.sflag [#allocation6], %s245
        %s247 = sand.u32 %s73, 1
        %s248 = smul.addr %s247, 8
        %s249 = scalar_lea.vmem [#allocation5], %s248
        %p250 = pneg %p86
        %p251 = pneg %p83
        %p252 = scmp.lt.s32.totalorder %s27, 1
        %s253 = scalar_select %p252, %s27, 1
        %p254 = scmp.lt.s32.totalorder %s28, 0
        %s255 = scalar_select %p254, %s28, 0
        %s256 = sadd.s32 %s255, %s253
        %s257 = smul.addr %s256, 2
        %s258 = scalar_lea.vmem %s2, %s257
        %p259 = pneg %p114
        %p260 = pneg %p111
        %p261 = pneg %p140
        %p262 = pneg %p137
        %s263 = sand.u32 %s127, 1
        %s264 = scalar_lea.sflag [#allocation4], %s263
        %s265 = sand.u32 %s127, 1
        %s266 = smul.addr %s265, 2
        %s267 = scalar_lea.vmem [#allocation7], %s266
        %p268 = scmp.lt.s32.totalorder %s27, 1
        %s269 = scalar_select %p268, %s27, 1
        %p270 = scmp.lt.s32.totalorder %s28, 0
        %s271 = scalar_select %p270, %s28, 0
        %s272 = sadd.s32 %s271, %s269
        %s273 = smul.addr %s272, 2
        %s274 = scalar_lea.vmem %s2, %s273
        %p275 = scmp.eq.s32.totalorder %s28, 0
        // Predicated region
        $region41: #{tpu_custom_call.1} parent=31 // pred_check
          %p276 = pneg %p275
        $region42: #{tpu_custom_call.1} parent=31 // pred_check_branch
          %278 = sbr.rel (%p276) target = $region44
        $region43: #{tpu_custom_call.1} parent=31 // pred_region
          %279 = vst [vmem:[%s267] sm:$0x3] 0.0
        $region44: #{tpu_custom_call.1} parent=31 // pred_fallthru
          _
        %v280 = vld [vmem:[%s224] sm:$0x3]
        %v281 = vld [vmem:[%s233] sm:$0x3]
        %v282 = vsub.f32 %v280, %v281
        %v283 = vmul.f32 %v282, %v282
        %s284 = scalar_lea.vmem %s224, 2 [#allocation2]
        %v285 = vld [vmem:[%s284] sm:$0x3]
        %s286 = scalar_lea.vmem %s233, 2 [#allocation5]
        %v287 = vld [vmem:[%s286] sm:$0x3]
        %v288 = vsub.f32 %v285, %v287
        %v289 = vmul.f32 %v288, %v288
        %v290 = vadd.f32 %v283, %v289
        %s291 = scalar_lea.vmem %s224, 4 [#allocation2]
        %v292 = vld [vmem:[%s291] sm:$0x3]
        %s293 = scalar_lea.vmem %s233, 4 [#allocation5]
        %v294 = vld [vmem:[%s293] sm:$0x3]
        %v295 = vsub.f32 %v292, %v294
        %v296 = vmul.f32 %v295, %v295
        %v297 = vadd.f32 %v290, %v296
        %s298 = scalar_lea.vmem %s224, 6 [#allocation2]
        %v299 = vld [vmem:[%s298] sm:$0x3]
        %s300 = scalar_lea.vmem %s233, 6 [#allocation5]
        %v301 = vld [vmem:[%s300] sm:$0x3]
        %v302 = vsub.f32 %v299, %v301
        %v303 = vmul.f32 %v302, %v302
        %v304 = vadd.f32 %v297, %v303
        %v305 = vrsqrt.pop %v304
        %v306 = vmul.f32 %v304, %v305
        %vm307 = vcmp.eq.f32.partialorder %v304, inf
        %v308 = vsel %vm307, %v304, %v306
        %vm309 = vcmp.eq.f32.partialorder %v304, 0.0
        %v310 = vand.u32 %v304, 2147483648
        %v311 = vsel %vm309, %v310, %v308
        %v312 = vld [vmem:[%s274] sm:$0x3]
        %v313 = vsub.f32 %v311, 0.3
        %v314 = vmax.f32 %v313, 0.0
        %v315 = vsub.f32 2.2, %v311
        %v316 = vmax.f32 %v315, 0.0
        %v317 = vmul.f32 %v316, %v316
        %v318 = vmul.f32 %v317, %v312
        %v319 = vmul.f32 %v314, %v314
        %v320 = vsub.f32 1.0, %v312
        %v321 = vmul.f32 %v319, %v320
        %v322 = vadd.f32 %v318, %v321
        %v323 = vld [vmem:[%s267] sm:$0x3]
        %v324 = vadd.f32 %v323, %v322
        %325 = vst [vmem:[%s267] sm:$0x3] %v324
        %s326 = sand.u32 %s127, 1
        %s327 = scalar_lea.sflag [#allocation4], %s326
        %s328 = sand.u32 %s127, 1
        %s329 = smul.addr %s328, 2
        %s330 = scalar_lea.vmem [#allocation7], %s329
        // Predicated region
        $region45: #{tpu_custom_call.1} parent=31 // pred_check
          %p331 = pneg %p137
        $region46: #{tpu_custom_call.1} parent=31 // pred_check_branch
          %333 = sbr.rel (%p331) target = $region48
        $region47: #{tpu_custom_call.1} parent=31 // pred_region
          %s335 = ssub.s32 32, 32
          %336 = vsyncadd %s327, %s335
          %s337 = smul.addr %s27, 32
          %s338 = scalar_lea.hbm %s3, %s337
          %s340 = sshll.u32 %s330, 4
          %s341 = int_to_ptr.vmem [resolvable:$true] %s340
          %343 = dma.vmem_to_hbm [thread:$0]  %s341, 32, %s338, %s327
        $region48: #{tpu_custom_call.1} parent=31 // pred_fallthru
          _
      $region32: #{tpu_custom_call.1} parent=5 // pred_fallthru
        _
      %p344 = scmp.le.s32.totalorder 2, %s18
      // Predicated region
      $region49: #{tpu_custom_call.1} parent=5 // pred_check
        %p345 = pneg %p344
      $region50: #{tpu_custom_call.1} parent=5 // pred_check_branch
        %347 = sbr.rel (%p345) target = $region52
      $region51: #{tpu_custom_call.1} parent=5 // pred_region
        %s348 = ssub.s32 %s18, 2
        // Predicated region
        $region53: #{tpu_custom_call.1} parent=51 // pred_check
          %p349 = pneg %p143
        $region54: #{tpu_custom_call.1} parent=51 // pred_check_branch
          %351 = sbr.rel (%p349) target = $region56
        $region55: #{tpu_custom_call.1} parent=51 // pred_region
          %s352 = sand.u32 %s128, 1
          %s353 = scalar_lea.sflag [#allocation4], %s352
          %s354 = sand.u32 %s128, 1
          %s355 = smul.addr %s354, 2
          %s356 = scalar_lea.vmem [#allocation7], %s355
          %357 = dma.done %s353, 32
        $region56: #{tpu_custom_call.1} parent=51 // pred_fallthru
          _
      $region52: #{tpu_custom_call.1} parent=5 // pred_fallthru
        _
    $region6: #{tpu_custom_call.1} parent=1 // loop_footer
      %s22 = sadd.s32 1, %s18
    $region7: #{tpu_custom_call.1} parent=1 // loop_footer_branch
      %17 = sbr.rel target = $region3
    $region8: #{tpu_custom_call.1} parent=1 // loop_exit
      _
    %358 = vsyncpa [#allocation3], 1
    %s359 = scalar_lea.sflag [#allocation3], 1
    %360 = vsyncpa %s359, 1
    %361 = vsyncpa [#allocation6], 1
    %s362 = scalar_lea.sflag [#allocation6], 1
    %363 = vsyncpa %s362, 1
    %364 = vsyncpa [#allocation4], 1
    %s365 = scalar_lea.sflag [#allocation4], 1
    %366 = vsyncpa %s365, 1

</llo_original>
